<compile_context>
chip_gen: v5e
topology: v5e:2x2
jax: 0.10.0
libtpu: 0.0.40
codegen_flags: <defaults>
</compile_context>

<pallas_src>
import functools

import jax
import jax.numpy as jnp
from jax import lax
from jax.experimental import pallas as pl
from jax.experimental.pallas import tpu as pltpu


def _conv_pool_bias_tanh_kernel(lhs_ref, w_ref, b_ref, o_ref, *, n_win):
    # lhs_ref: (block_m, WIN_K) bf16 -- per pooled output position, the full
    #          (PK+KH-1, PK+KW-1, C_in) input window, features ordered
    #          (c_in slowest, win_h, win_w fastest); rows ordered (b, ph, pw).
    # w_ref  : (n_win, WIN_K, C_out) bf16 -- conv weights zero-embedded at each
    #          pool-window offset j = dh*PK + dw.
    # b_ref  : (1, C_out)       f32
    # o_ref  : (block_m, C_out) f32 -- pooled + activated output.
    lhs = lhs_ref[...]
    # n_win small MXU matmuls (f32 accumulation); part j is the conv output at
    # pool-window offset j for every pooled position in this row block.
    parts = [jnp.dot(lhs, w_ref[j], preferred_element_type=jnp.float32)
             for j in range(n_win)]
    # MaxPool FIRST: balanced pairwise VPU max tree over the n_win parts.
    while len(parts) > 1:
        nxt = [jnp.maximum(parts[k], parts[k + 1])
               for k in range(0, len(parts) - 1, 2)]
        if len(parts) % 2:
            nxt.append(parts[-1])
        parts = nxt
    # Bias + tanh only on the pooled tile (n_win x less EUP/VPU work).
    # Exact reorder: bias is per-channel constant, tanh is monotone.
    o_ref[...] = jnp.tanh(parts[0] + b_ref[...]).astype(o_ref.dtype)


def _choose_block_m(group, target):
    """Largest multiple-of-8 divisor of `group` that is <= target (or `group`)."""
    if group <= target:
        return group
    for bm in range(target - (target % 8), 7, -8):
        if group % bm == 0:
            return bm
    # TODO(synk): pad the row dimension when no aligned divisor exists.
    return group


def make_ddtp_conv_forward(weight_oihw, bias, *, stride=1, padding=0,
                           pool_kernel=None, pool_stride=None,
                           block_m_target=512):
    """One-time setup (weight reshape / zero-embed / bf16 cast), returns a
    jitted forward(x_nchw) implementing conv -> tanh -> maxpool via Pallas."""
    assert stride == 1 and padding == 0, "only stride=1, padding=0 implemented"
    # TODO(synk): conv stride/padding/dilation/groups, 'average' pooling and
    # non-tanh forward activations of the module are not implemented here.
    C_out, C_in, KH, KW = weight_oihw.shape
    PK = KH if pool_kernel is None else pool_kernel
    PS = PK if pool_stride is None else pool_stride
    SH, SW = PK + KH - 1, PK + KW - 1          # input window per pooled pixel
    WIN_K = C_in * SH * SW
    n_win = PK * PK

    # ---- one-time weight / bias prep (hoisted out of the forward path) ----
    # w_all[j, ci*SH*SW + sh*SW + sw, co] = weight[co, ci, sh-dh, sw-dw]
    # for j = dh*PK + dw when the tap lands inside the kernel, else 0.
    w_cin = jnp.transpose(weight_oihw.astype(jnp.float32), (1, 2, 3, 0))  # (Ci,KH,KW,Co)
    w_all = jnp.zeros((n_win, C_in, SH, SW, C_out), jnp.float32)
    for dh in range(PK):
        for dw in range(PK):
            w_all = w_all.at[dh * PK + dw, :, dh:dh + KH, dw:dw + KW, :].set(w_cin)
    w_all = w_all.reshape(n_win, WIN_K, C_out).astype(jnp.bfloat16)
    b2d = bias.reshape(1, C_out).astype(jnp.float32)

    kernel = functools.partial(_conv_pool_bias_tanh_kernel, n_win=n_win)

    @jax.jit
    def forward(x_nchw):
        B, C_in_x, H, W = x_nchw.shape
        assert C_in_x == C_in
        H_out, W_out = H - KH + 1, W - KW + 1
        Hp = (H_out - PK) // PS + 1
        Wp = (W_out - PK) // PS + 1
        group = B * Hp * Wp                     # pooled output rows

        # Single fused XLA op: for each pooled position, the (SH, SW, C_in)
        # input window that feeds it. Feature ordering of
        # conv_general_dilated_patches is (c_in slowest, sh, sw fastest),
        # matching w_all above. bf16 MXU operands, exact (identity taps).
        patches = lax.conv_general_dilated_patches(
            x_nchw.astype(jnp.bfloat16),
            filter_shape=(SH, SW),
            window_strides=(PS, PS),
            padding="VALID",
            dimension_numbers=("NCHW", "OIHW", "NHWC"))   # -> (B, Hp, Wp, WIN_K)
        lhs = patches.reshape(group, WIN_K)

        block_m = _choose_block_m(group, block_m_target)
        grid_m = group // block_m

        pooled = pl.pallas_call(
            kernel,
            out_shape=jax.ShapeDtypeStruct((group, C_out), jnp.float32),
            grid=(grid_m,),
            in_specs=[
                pl.BlockSpec((block_m, WIN_K), lambda i: (i, 0)),
                pl.BlockSpec((n_win, WIN_K, C_out), lambda i: (0, 0, 0)),
                pl.BlockSpec((1, C_out), lambda i: (0, 0)),
            ],
            out_specs=pl.BlockSpec((block_m, C_out), lambda i: (i, 0)),
            compiler_params=pltpu.CompilerParams(
                dimension_semantics=("parallel",)),
        )(lhs, w_all, b2d)

        # Rows are (b, ph, pw) x channels -> back to PyTorch NCHW.
        return jnp.transpose(pooled.reshape(B, Hp, Wp, C_out), (0, 3, 1, 2))

    return forward


def ddtp_conv_layer_forward(x_nchw, weight_oihw, bias, **kwargs):
    """Convenience one-shot wrapper (prefer make_ddtp_conv_forward to cache
    the weight preparation across calls)."""
    return make_ddtp_conv_forward(weight_oihw, bias, **kwargs)(x_nchw)


def _reference_forward(x_nchw, weight_oihw, bias, pool_kernel, pool_stride):
    y = lax.conv_general_dilated(
        x_nchw, weight_oihw, window_strides=(1, 1), padding="VALID",
        dimension_numbers=("NCHW", "OIHW", "NCHW"),
        precision=lax.Precision.HIGHEST)
    y = y + bias[None, :, None, None]
    y = jnp.tanh(y)
    y = lax.reduce_window(
        y, -jnp.inf, lax.max,
        window_dimensions=(1, 1, pool_kernel, pool_kernel),
        window_strides=(1, 1, pool_stride, pool_stride),
        padding="VALID")
    return y


if __name__ == "__main__":
    # Module hyperparameters (small shapes consistent with the PyTorch module).
    B, C_in, H, W = 2, 4, 16, 16
    C_out, K = 8, 3
    pool_k, pool_s = K, K                     # MaxPool2d defaults from __init__

    H_out, W_out = H - K + 1, W - K + 1       # 14, 14
    Hp, Wp = (H_out - pool_k) // pool_s + 1, (W_out - pool_k) // pool_s + 1  # 4, 4
    feature_size = (C_out, Hp, Wp)            # [8, 4, 4]
    output_size = 10

    key = jax.random.PRNGKey(0)
    kx, kw, kfb, kb = jax.random.split(key, 4)

    # Deterministic xavier_normal init of conv weight (OIHW), zero bias.
    fan_in = C_in * K * K
    fan_out = C_out * K * K
    w_std = (2.0 / (fan_in + fan_out)) ** 0.5
    weight = w_std * jax.random.normal(kw, (C_out, C_in, K, K), jnp.float32)
    bias = jnp.zeros((C_out,), jnp.float32)

    # Feedback weights (not used in forward(), kept for parity with __init__).
    flat = feature_size[0] * feature_size[1] * feature_size[2]
    fb_std = (2.0 / (flat + output_size)) ** 0.5
    feedbackweights = fb_std * jax.random.normal(kfb, (flat, output_size), jnp.float32)

    x = jax.random.normal(kx, (B, C_in, H, W), jnp.float32)

    forward = make_ddtp_conv_forward(weight, bias,
                                     pool_kernel=pool_k, pool_stride=pool_s)
    out = jax.block_until_ready(forward(x))
    assert out.shape == (B, C_out, Hp, Wp), out.shape

    # Tight check against a reference fed the same bf16-rounded operands
    # (the kernel uses bf16 MXU operands with f32 accumulation).
    x_r = x.astype(jnp.bfloat16).astype(jnp.float32)
    w_r = weight.astype(jnp.bfloat16).astype(jnp.float32)
    ref_bf = _reference_forward(x_r, w_r, bias, pool_k, pool_s)
    assert jnp.allclose(out, ref_bf, atol=1e-4, rtol=1e-4), \
        "mismatch vs bf16-rounded reference"

    # Loose sanity check against the full-f32 reference (only bf16 input rounding).
    ref_f32 = _reference_forward(x, weight, bias, pool_k, pool_s)
    assert jnp.allclose(out, ref_f32, atol=5e-2, rtol=5e-2), \
        "mismatch vs f32 reference"

    # Extra check with a non-zero bias to validate the pool-before-bias+tanh
    # reorder end-to-end (the module inits bias to 0, so test separately).
    bias_nz = 0.1 * jax.random.normal(kb, (C_out,), jnp.float32)
    out_nz = jax.block_until_ready(
        make_ddtp_conv_forward(weight, bias_nz,
                               pool_kernel=pool_k, pool_stride=pool_s)(x))
    ref_nz = _reference_forward(x_r, w_r, bias_nz, pool_k, pool_s)
    assert jnp.allclose(out_nz, ref_nz, atol=1e-4, rtol=1e-4), \
        "mismatch vs bf16-rounded reference (non-zero bias)"

    print("KERNEL_OK")
</pallas_src>

<mosaic_0001>
module attributes {stable_mosaic.version = 11 : i64} {
  func.func @_conv_pool_bias_tanh_kernel(%arg0: i32, %arg1: memref<32x100xbf16, #tpu.memory_space<vmem>>, %arg2: memref<9x100x8xbf16, #tpu.memory_space<vmem>>, %arg3: memref<1x8xf32, #tpu.memory_space<vmem>>, %arg4: memref<32x8xf32, #tpu.memory_space<vmem>>) attributes {dimension_semantics = [#tpu.dimension_semantics<parallel>], iteration_bounds = array<i64: 1>, scalar_prefetch = 0 : i64, scratch_operands = 0 : i64, tpu.core_type = #tpu.core_type<tc>, window_params = [{transform_indices = @transform_0, window_bounds = array<i64: 32, 100>}, {pipeline_mode = #tpu.pipeline_mode<synchronous>, transform_indices = @transform_1, window_bounds = array<i64: 9, 100, 8>}, {pipeline_mode = #tpu.pipeline_mode<synchronous>, transform_indices = @transform_2, window_bounds = array<i64: 1, 8>}, {transform_indices = @transform_3, window_bounds = array<i64: 32, 8>}]} {
    %c0 = arith.constant 0 : index
    %c0_0 = arith.constant 0 : index
    %0 = vector.load %arg1[%c0, %c0_0] : memref<32x100xbf16, #tpu.memory_space<vmem>>, vector<32x100xbf16>
    %c0_1 = arith.constant 0 : index
    %c0_2 = arith.constant 0 : index
    %c0_3 = arith.constant 0 : index
    %1 = vector.load %arg2[%c0_1, %c0_2, %c0_3] : memref<9x100x8xbf16, #tpu.memory_space<vmem>>, vector<1x100x8xbf16>
    %2 = vector.shape_cast %1 : vector<1x100x8xbf16> to vector<100x8xbf16>
    %cst = arith.constant dense<0.000000e+00> : vector<32x8xf32>
    %3 = tpu.matmul %0, %2, %cst {dimension_numbers = #tpu.dot_dimension_numbers<[1], [0], [0], [1], [0, 0, 1, 1], [], []>} : vector<32x100xbf16>, vector<100x8xbf16>, vector<32x8xf32> -> vector<32x8xf32>
    %c1 = arith.constant 1 : index
    %c0_4 = arith.constant 0 : index
    %c0_5 = arith.constant 0 : index
    %4 = vector.load %arg2[%c1, %c0_4, %c0_5] : memref<9x100x8xbf16, #tpu.memory_space<vmem>>, vector<1x100x8xbf16>
    %5 = vector.shape_cast %4 : vector<1x100x8xbf16> to vector<100x8xbf16>
    %cst_6 = arith.constant dense<0.000000e+00> : vector<32x8xf32>
    %6 = tpu.matmul %0, %5, %cst_6 {dimension_numbers = #tpu.dot_dimension_numbers<[1], [0], [0], [1], [0, 0, 1, 1], [], []>} : vector<32x100xbf16>, vector<100x8xbf16>, vector<32x8xf32> -> vector<32x8xf32>
    %c2 = arith.constant 2 : index
    %c0_7 = arith.constant 0 : index
    %c0_8 = arith.constant 0 : index
    %7 = vector.load %arg2[%c2, %c0_7, %c0_8] : memref<9x100x8xbf16, #tpu.memory_space<vmem>>, vector<1x100x8xbf16>
    %8 = vector.shape_cast %7 : vector<1x100x8xbf16> to vector<100x8xbf16>
    %cst_9 = arith.constant dense<0.000000e+00> : vector<32x8xf32>
    %9 = tpu.matmul %0, %8, %cst_9 {dimension_numbers = #tpu.dot_dimension_numbers<[1], [0], [0], [1], [0, 0, 1, 1], [], []>} : vector<32x100xbf16>, vector<100x8xbf16>, vector<32x8xf32> -> vector<32x8xf32>
    %c3 = arith.constant 3 : index
    %c0_10 = arith.constant 0 : index
    %c0_11 = arith.constant 0 : index
    %10 = vector.load %arg2[%c3, %c0_10, %c0_11] : memref<9x100x8xbf16, #tpu.memory_space<vmem>>, vector<1x100x8xbf16>
    %11 = vector.shape_cast %10 : vector<1x100x8xbf16> to vector<100x8xbf16>
    %cst_12 = arith.constant dense<0.000000e+00> : vector<32x8xf32>
    %12 = tpu.matmul %0, %11, %cst_12 {dimension_numbers = #tpu.dot_dimension_numbers<[1], [0], [0], [1], [0, 0, 1, 1], [], []>} : vector<32x100xbf16>, vector<100x8xbf16>, vector<32x8xf32> -> vector<32x8xf32>
    %c4 = arith.constant 4 : index
    %c0_13 = arith.constant 0 : index
    %c0_14 = arith.constant 0 : index
    %13 = vector.load %arg2[%c4, %c0_13, %c0_14] : memref<9x100x8xbf16, #tpu.memory_space<vmem>>, vector<1x100x8xbf16>
    %14 = vector.shape_cast %13 : vector<1x100x8xbf16> to vector<100x8xbf16>
    %cst_15 = arith.constant dense<0.000000e+00> : vector<32x8xf32>
    %15 = tpu.matmul %0, %14, %cst_15 {dimension_numbers = #tpu.dot_dimension_numbers<[1], [0], [0], [1], [0, 0, 1, 1], [], []>} : vector<32x100xbf16>, vector<100x8xbf16>, vector<32x8xf32> -> vector<32x8xf32>
    %c5 = arith.constant 5 : index
    %c0_16 = arith.constant 0 : index
    %c0_17 = arith.constant 0 : index
    %16 = vector.load %arg2[%c5, %c0_16, %c0_17] : memref<9x100x8xbf16, #tpu.memory_space<vmem>>, vector<1x100x8xbf16>
    %17 = vector.shape_cast %16 : vector<1x100x8xbf16> to vector<100x8xbf16>
    %cst_18 = arith.constant dense<0.000000e+00> : vector<32x8xf32>
    %18 = tpu.matmul %0, %17, %cst_18 {dimension_numbers = #tpu.dot_dimension_numbers<[1], [0], [0], [1], [0, 0, 1, 1], [], []>} : vector<32x100xbf16>, vector<100x8xbf16>, vector<32x8xf32> -> vector<32x8xf32>
    %c6 = arith.constant 6 : index
    %c0_19 = arith.constant 0 : index
    %c0_20 = arith.constant 0 : index
    %19 = vector.load %arg2[%c6, %c0_19, %c0_20] : memref<9x100x8xbf16, #tpu.memory_space<vmem>>, vector<1x100x8xbf16>
    %20 = vector.shape_cast %19 : vector<1x100x8xbf16> to vector<100x8xbf16>
    %cst_21 = arith.constant dense<0.000000e+00> : vector<32x8xf32>
    %21 = tpu.matmul %0, %20, %cst_21 {dimension_numbers = #tpu.dot_dimension_numbers<[1], [0], [0], [1], [0, 0, 1, 1], [], []>} : vector<32x100xbf16>, vector<100x8xbf16>, vector<32x8xf32> -> vector<32x8xf32>
    %c7 = arith.constant 7 : index
    %c0_22 = arith.constant 0 : index
    %c0_23 = arith.constant 0 : index
    %22 = vector.load %arg2[%c7, %c0_22, %c0_23] : memref<9x100x8xbf16, #tpu.memory_space<vmem>>, vector<1x100x8xbf16>
    %23 = vector.shape_cast %22 : vector<1x100x8xbf16> to vector<100x8xbf16>
    %cst_24 = arith.constant dense<0.000000e+00> : vector<32x8xf32>
    %24 = tpu.matmul %0, %23, %cst_24 {dimension_numbers = #tpu.dot_dimension_numbers<[1], [0], [0], [1], [0, 0, 1, 1], [], []>} : vector<32x100xbf16>, vector<100x8xbf16>, vector<32x8xf32> -> vector<32x8xf32>
    %c8 = arith.constant 8 : index
    %c0_25 = arith.constant 0 : index
    %c0_26 = arith.constant 0 : index
    %25 = vector.load %arg2[%c8, %c0_25, %c0_26] : memref<9x100x8xbf16, #tpu.memory_space<vmem>>, vector<1x100x8xbf16>
    %26 = vector.shape_cast %25 : vector<1x100x8xbf16> to vector<100x8xbf16>
    %cst_27 = arith.constant dense<0.000000e+00> : vector<32x8xf32>
    %27 = tpu.matmul %0, %26, %cst_27 {dimension_numbers = #tpu.dot_dimension_numbers<[1], [0], [0], [1], [0, 0, 1, 1], [], []>} : vector<32x100xbf16>, vector<100x8xbf16>, vector<32x8xf32> -> vector<32x8xf32>
    %28 = arith.maximumf %3, %6 : vector<32x8xf32>
    %29 = arith.maximumf %9, %12 : vector<32x8xf32>
    %30 = arith.maximumf %15, %18 : vector<32x8xf32>
    %31 = arith.maximumf %21, %24 : vector<32x8xf32>
    %32 = arith.maximumf %28, %29 : vector<32x8xf32>
    %33 = arith.maximumf %30, %31 : vector<32x8xf32>
    %34 = arith.maximumf %32, %33 : vector<32x8xf32>
    %35 = arith.maximumf %34, %27 : vector<32x8xf32>
    %c0_28 = arith.constant 0 : index
    %c0_29 = arith.constant 0 : index
    %36 = vector.load %arg3[%c0_28, %c0_29] : memref<1x8xf32, #tpu.memory_space<vmem>>, vector<1x8xf32>
    %37 = vector.broadcast %36 : vector<1x8xf32> to vector<32x8xf32>
    %38 = arith.addf %35, %37 : vector<32x8xf32>
    %39 = math.tanh %38 : vector<32x8xf32>
    %c0_30 = arith.constant 0 : index
    %c0_31 = arith.constant 0 : index
    %40 = vector.load %arg4[%c0_30, %c0_31] : memref<32x8xf32, #tpu.memory_space<vmem>>, vector<32x8xf32>
    tpu.vector_store %arg4[%c0_30, %c0_31], %39 {strides = array<i32>} : memref<32x8xf32, #tpu.memory_space<vmem>>, vector<32x8xf32>,
    return
  }
  func.func @transform_0(%arg0: i32) -> (i32, i32) {
    %c0_i32 = arith.constant 0 : i32
    %c0_i32_0 = arith.constant 0 : i32
    return %arg0, %c0_i32 : i32, i32
  }
  func.func @transform_1(%arg0: i32) -> (i32, i32, i32) {
    %c0_i32 = arith.constant 0 : i32
    %c0_i32_0 = arith.constant 0 : i32
    %c0_i32_1 = arith.constant 0 : i32
    %c0_i32_2 = arith.constant 0 : i32
    return %c0_i32, %c0_i32_0, %c0_i32_1 : i32, i32, i32
  }
  func.func @transform_2(%arg0: i32) -> (i32, i32) {
    %c0_i32 = arith.constant 0 : i32
    %c0_i32_0 = arith.constant 0 : i32
    %c0_i32_1 = arith.constant 0 : i32
    return %c0_i32, %c0_i32_0 : i32, i32
  }
  func.func @transform_3(%arg0: i32) -> (i32, i32) {
    %c0_i32 = arith.constant 0 : i32
    %c0_i32_0 = arith.constant 0 : i32
    return %arg0, %c0_i32 : i32, i32
  }
}

</mosaic_0001>

<llo_original>
// kernel: forward.1
$region0: #{forward.1}
  #allocation0 [shape = 'u32[]', space=smem, size = 0x4, offset = 0x4, fixed_abs, tag = 'smem constant byte address 0x4 - core index']
  #allocation1 [shape = 'u32[72,128]{1,0:T(1,128)}', space=vmem, size = 0x9000, scoped, tag = 'internal scratch']
  %s0 = inlined_call_operand.vmem [shape: bf16[32,100], index: 0, kind: input, shape index: {}]
  %s1 = inlined_call_operand.vmem [shape: bf16[9,100,8], index: 1, kind: input, shape index: {}]
  %s2 = inlined_call_operand.vmem [shape: f32[1,8], index: 2, kind: input, shape index: {}]
  %s3 = inlined_call_operand.hbm [shape: f32[32,8], index: 3, kind: output, shape index: {}]
  %s4 = sld [smem:[#allocation0]]
  $region22: #{forward.1} parent=0
    _
  %s6 = ssub.s32 1, %s4
  %s7 = scalar_select 0, %s6, %s4
  $region1: #{forward.1} parent=0
    #allocation2 [shape = 'u8[16384]{0}', space=vmem, size = 0x4000, scoped, tag = 'output window, operand 0, single buffered']
    #allocation3 [shape = 's32[1]{0}', space=sflag, size = 0x4, scoped, tag = 'scoped memory for forward.1']
    %8 = vsyncpa [#allocation3], 0
    // Predicated region
    $region2: #{forward.1} parent=1 // pred_check
      _
    $region3: #{forward.1} parent=1 // pred_check_branch
      %10 = sbr.rel (0) target = $region5
    $region4: #{forward.1} parent=1 // pred_region
      _
    $region5: #{forward.1} parent=1 // pred_fallthru
      _
    // Predicated region
    $region6: #{forward.1} parent=1 // pred_check
      _
    $region7: #{forward.1} parent=1 // pred_check_branch
      %12 = sbr.rel (0) target = $region9
    $region8: #{forward.1} parent=1 // pred_region
      _
    $region9: #{forward.1} parent=1 // pred_fallthru
      _
    // Predicated region
    $region10: #{forward.1} parent=1 // pred_check
      _
    $region11: #{forward.1} parent=1 // pred_check_branch
      %14 = sbr.rel (0) target = $region13
    $region12: #{forward.1} parent=1 // pred_region
      _
    $region13: #{forward.1} parent=1 // pred_fallthru
      _
    %v16 = vld [vmem:[%s0] sm:$0xf]
    %v17 = vld [vmem:[%s0 + $0x4] sm:$0xf]
    %v18 = vld [vmem:[%s0 + $0x8] sm:$0xf]
    %v19 = vld [vmem:[%s0 + $0xc] sm:$0xf]
    %v20 = vld [vmem:[%s1] sm:$0xf]
    %v21 = vld [vmem:[%s1 + $0x4] sm:$0xf]
    %v22 = vld [vmem:[%s1 + $0x8] sm:$0xf]
    %v23 = vld [vmem:[%s1 + $0xc] sm:$0xf]
    %v24 = vld [vmem:[%s1 + $0x10] sm:$0xf]
    %v25 = vld [vmem:[%s1 + $0x14] sm:$0xf]
    %v26 = vld [vmem:[%s1 + $0x18] sm:$0xf]
    %v27 = vld [vmem:[%s1 + $0x1c] sm:$0xf]
    %v28 = vld [vmem:[%s1 + $0x20] sm:$0xf]
    %v29 = vld [vmem:[%s1 + $0x24] sm:$0xf]
    %v30 = vld [vmem:[%s1 + $0x28] sm:$0xf]
    %v31 = vld [vmem:[%s1 + $0x2c] sm:$0xf]
    %v32 = vld [vmem:[%s1 + $0x30] sm:$0x3]
    %v37 = vunpack.c.l.b16 %v16
    %v38 = vunpack.c.l.b16 %v17
    %v39 = vunpack.c.l.b16 %v18
    %v40 = vunpack.c.l.b16 %v19
    %v41 = vpack.c.b16 %v38, %v37
    %v42 = vpack.c.b16 %v40, %v39
    %v56 = vunpack.c.l.b16 %v20
    %v57 = vunpack.c.l.b16 %v21
    %v58 = vunpack.c.l.b16 %v22
    %v59 = vunpack.c.l.b16 %v23
    %v60 = vunpack.c.l.b16 %v24
    %v61 = vunpack.c.l.b16 %v25
    %v62 = vunpack.c.l.b16 %v26
    %v63 = vunpack.c.l.b16 %v27
    %v64 = vunpack.c.l.b16 %v28
    %v65 = vunpack.c.l.b16 %v29
    %v66 = vunpack.c.l.b16 %v30
    %v67 = vunpack.c.l.b16 %v31
    %v68 = vunpack.c.l.b16 %v32
    %v69 = vpack.c.b16 %v57, %v56
    %v70 = vpack.c.b16 %v59, %v58
    %v71 = vpack.c.b16 %v61, %v60
    %v72 = vpack.c.b16 %v63, %v62
    %v73 = vpack.c.b16 %v65, %v64
    %v74 = vpack.c.b16 %v67, %v66
    %v75 = vpack.c.b16 %v68, %v68
    %vm82 = vcmask 818176
    %v84 = vsel %vm82, %v41, 0
    %v87 = vsel %vm82, %v42, 0
    %vm89 = vcmask 1041408
    %v91 = vsel %vm89, %v75, 0
    %93 = vmatpush.bf16.msra.mxu0 0
    %94 = vmatpush.bf16.msra.mxu0 %v91
    %95 = vmatpush.bf16.msra.mxu0 %v74
    %96 = vmatpush.bf16.msra.mxu0 %v73
    %97 = vmatpush.bf16.msra.mxu0 %v72
    %98 = vmatpush.bf16.msra.mxu0 %v71
    %99 = vmatpush.bf16.msra.mxu0 %v70
    %100 = vmatpush.bf16.msra.mxu0 %v69
    %101 = vmatmul.bf16.gmra.mxu0 %v84
    %v102 = vpop.f32.mrf.mxu0
    %v103 = vadd.f32 0.0, %v102
    %v104 = vpop.f32.mrf.mxu0
    %v105 = vadd.f32 0.0, %v104
    %106 = vmatmul.bf16.gmra.mxu0 %v87
    %v107 = vpop.f32.mrf.mxu0
    %v108 = vadd.f32 0.0, %v107
    %v109 = vpop.f32.mrf.mxu0
    %v110 = vadd.f32 0.0, %v109
    %111 = vdwg.mxu0
    %s112 = scalar_lea.vmem %s1, 52
    %v113 = vld [vmem:[%s112] sm:$0xf]
    %v114 = vld [vmem:[%s112 + $0x4] sm:$0xf]
    %v115 = vld [vmem:[%s112 + $0x8] sm:$0xf]
    %v116 = vld [vmem:[%s112 + $0xc] sm:$0xf]
    %v117 = vld [vmem:[%s112 + $0x10] sm:$0xf]
    %v118 = vld [vmem:[%s112 + $0x14] sm:$0xf]
    %v119 = vld [vmem:[%s112 + $0x18] sm:$0xf]
    %v120 = vld [vmem:[%s112 + $0x1c] sm:$0xf]
    %v121 = vld [vmem:[%s112 + $0x20] sm:$0xf]
    %v122 = vld [vmem:[%s112 + $0x24] sm:$0xf]
    %v123 = vld [vmem:[%s112 + $0x28] sm:$0xf]
    %v124 = vld [vmem:[%s112 + $0x2c] sm:$0xf]
    %v125 = vld [vmem:[%s112 + $0x30] sm:$0x3]
    %v139 = vunpack.c.l.b16 %v113
    %v140 = vunpack.c.l.b16 %v114
    %v141 = vunpack.c.l.b16 %v115
    %v142 = vunpack.c.l.b16 %v116
    %v143 = vunpack.c.l.b16 %v117
    %v144 = vunpack.c.l.b16 %v118
    %v145 = vunpack.c.l.b16 %v119
    %v146 = vunpack.c.l.b16 %v120
    %v147 = vunpack.c.l.b16 %v121
    %v148 = vunpack.c.l.b16 %v122
    %v149 = vunpack.c.l.b16 %v123
    %v150 = vunpack.c.l.b16 %v124
    %v151 = vunpack.c.l.b16 %v125
    %v152 = vpack.c.b16 %v140, %v139
    %v153 = vpack.c.b16 %v142, %v141
    %v154 = vpack.c.b16 %v144, %v143
    %v155 = vpack.c.b16 %v146, %v145
    %v156 = vpack.c.b16 %v148, %v147
    %v157 = vpack.c.b16 %v150, %v149
    %v158 = vpack.c.b16 %v151, %v151
    %v166 = vsel %vm89, %v158, 0
    %168 = vmatpush.bf16.msra.mxu0 0
    %169 = vmatpush.bf16.msra.mxu0 %v166
    %170 = vmatpush.bf16.msra.mxu0 %v157
    %171 = vmatpush.bf16.msra.mxu0 %v156
    %172 = vmatpush.bf16.msra.mxu0 %v155
    %173 = vmatpush.bf16.msra.mxu0 %v154
    %174 = vmatpush.bf16.msra.mxu0 %v153
    %175 = vmatpush.bf16.msra.mxu0 %v152
    %176 = vmatmul.bf16.gmra.mxu0 %v84
    %v177 = vpop.f32.mrf.mxu0
    %v178 = vadd.f32 0.0, %v177
    %v179 = vpop.f32.mrf.mxu0
    %v180 = vadd.f32 0.0, %v179
    %181 = vmatmul.bf16.gmra.mxu0 %v87
    %v182 = vpop.f32.mrf.mxu0
    %v183 = vadd.f32 0.0, %v182
    %v184 = vpop.f32.mrf.mxu0
    %v185 = vadd.f32 0.0, %v184
    %186 = vdwg.mxu0
    %s187 = scalar_lea.vmem %s1, 104
    %v188 = vld [vmem:[%s187] sm:$0xf]
    %v189 = vld [vmem:[%s187 + $0x4] sm:$0xf]
    %v190 = vld [vmem:[%s187 + $0x8] sm:$0xf]
    %v191 = vld [vmem:[%s187 + $0xc] sm:$0xf]
    %v192 = vld [vmem:[%s187 + $0x10] sm:$0xf]
    %v193 = vld [vmem:[%s187 + $0x14] sm:$0xf]
    %v194 = vld [vmem:[%s187 + $0x18] sm:$0xf]
    %v195 = vld [vmem:[%s187 + $0x1c] sm:$0xf]
    %v196 = vld [vmem:[%s187 + $0x20] sm:$0xf]
    %v197 = vld [vmem:[%s187 + $0x24] sm:$0xf]
    %v198 = vld [vmem:[%s187 + $0x28] sm:$0xf]
    %v199 = vld [vmem:[%s187 + $0x2c] sm:$0xf]
    %v200 = vld [vmem:[%s187 + $0x30] sm:$0x3]
    %v214 = vunpack.c.l.b16 %v188
    %v215 = vunpack.c.l.b16 %v189
    %v216 = vunpack.c.l.b16 %v190
    %v217 = vunpack.c.l.b16 %v191
    %v218 = vunpack.c.l.b16 %v192
    %v219 = vunpack.c.l.b16 %v193
    %v220 = vunpack.c.l.b16 %v194
    %v221 = vunpack.c.l.b16 %v195
    %v222 = vunpack.c.l.b16 %v196
    %v223 = vunpack.c.l.b16 %v197
    %v224 = vunpack.c.l.b16 %v198
    %v225 = vunpack.c.l.b16 %v199
    %v226 = vunpack.c.l.b16 %v200
    %v227 = vpack.c.b16 %v215, %v214
    %v228 = vpack.c.b16 %v217, %v216
    %v229 = vpack.c.b16 %v219, %v218
    %v230 = vpack.c.b16 %v221, %v220
    %v231 = vpack.c.b16 %v223, %v222
    %v232 = vpack.c.b16 %v225, %v224
    %v233 = vpack.c.b16 %v226, %v226
    %v241 = vsel %vm89, %v233, 0
    %243 = vmatpush.bf16.msra.mxu0 0
    %244 = vmatpush.bf16.msra.mxu0 %v241
    %245 = vmatpush.bf16.msra.mxu0 %v232
    %246 = vmatpush.bf16.msra.mxu0 %v231
    %247 = vmatpush.bf16.msra.mxu0 %v230
    %248 = vmatpush.bf16.msra.mxu0 %v229
    %249 = vmatpush.bf16.msra.mxu0 %v228
    %250 = vmatpush.bf16.msra.mxu0 %v227
    %251 = vmatmul.bf16.gmra.mxu0 %v84
    %v252 = vpop.f32.mrf.mxu0
    %v253 = vadd.f32 0.0, %v252
    %v254 = vpop.f32.mrf.mxu0
    %v255 = vadd.f32 0.0, %v254
    %256 = vmatmul.bf16.gmra.mxu0 %v87
    %v257 = vpop.f32.mrf.mxu0
    %v258 = vadd.f32 0.0, %v257
    %v259 = vpop.f32.mrf.mxu0
    %v260 = vadd.f32 0.0, %v259
    %261 = vdwg.mxu0
    %s262 = scalar_lea.vmem %s1, 156
    %v263 = vld [vmem:[%s262] sm:$0xf]
    %v264 = vld [vmem:[%s262 + $0x4] sm:$0xf]
    %v265 = vld [vmem:[%s262 + $0x8] sm:$0xf]
    %v266 = vld [vmem:[%s262 + $0xc] sm:$0xf]
    %v267 = vld [vmem:[%s262 + $0x10] sm:$0xf]
    %v268 = vld [vmem:[%s262 + $0x14] sm:$0xf]
    %v269 = vld [vmem:[%s262 + $0x18] sm:$0xf]
    %v270 = vld [vmem:[%s262 + $0x1c] sm:$0xf]
    %v271 = vld [vmem:[%s262 + $0x20] sm:$0xf]
    %v272 = vld [vmem:[%s262 + $0x24] sm:$0xf]
    %v273 = vld [vmem:[%s262 + $0x28] sm:$0xf]
    %v274 = vld [vmem:[%s262 + $0x2c] sm:$0xf]
    %v275 = vld [vmem:[%s262 + $0x30] sm:$0x3]
    %v289 = vunpack.c.l.b16 %v263
    %v290 = vunpack.c.l.b16 %v264
    %v291 = vunpack.c.l.b16 %v265
    %v292 = vunpack.c.l.b16 %v266
    %v293 = vunpack.c.l.b16 %v267
    %v294 = vunpack.c.l.b16 %v268
    %v295 = vunpack.c.l.b16 %v269
    %v296 = vunpack.c.l.b16 %v270
    %v297 = vunpack.c.l.b16 %v271
    %v298 = vunpack.c.l.b16 %v272
    %v299 = vunpack.c.l.b16 %v273
    %v300 = vunpack.c.l.b16 %v274
    %v301 = vunpack.c.l.b16 %v275
    %v302 = vpack.c.b16 %v290, %v289
    %v303 = vpack.c.b16 %v292, %v291
    %v304 = vpack.c.b16 %v294, %v293
    %v305 = vpack.c.b16 %v296, %v295
    %v306 = vpack.c.b16 %v298, %v297
    %v307 = vpack.c.b16 %v300, %v299
    %v308 = vpack.c.b16 %v301, %v301
    %v316 = vsel %vm89, %v308, 0
    %318 = vmatpush.bf16.msra.mxu0 0
    %319 = vmatpush.bf16.msra.mxu0 %v316
    %320 = vmatpush.bf16.msra.mxu0 %v307
    %321 = vmatpush.bf16.msra.mxu0 %v306
    %322 = vmatpush.bf16.msra.mxu0 %v305
    %323 = vmatpush.bf16.msra.mxu0 %v304
    %324 = vmatpush.bf16.msra.mxu0 %v303
    %325 = vmatpush.bf16.msra.mxu0 %v302
    %326 = vmatmul.bf16.gmra.mxu0 %v84
    %v327 = vpop.f32.mrf.mxu0
    %v328 = vadd.f32 0.0, %v327
    %v329 = vpop.f32.mrf.mxu0
    %v330 = vadd.f32 0.0, %v329
    %331 = vmatmul.bf16.gmra.mxu0 %v87
    %v332 = vpop.f32.mrf.mxu0
    %v333 = vadd.f32 0.0, %v332
    %v334 = vpop.f32.mrf.mxu0
    %v335 = vadd.f32 0.0, %v334
    %336 = vdwg.mxu0
    %s337 = scalar_lea.vmem %s1, 208
    %v338 = vld [vmem:[%s337] sm:$0xf]
    %v339 = vld [vmem:[%s337 + $0x4] sm:$0xf]
    %v340 = vld [vmem:[%s337 + $0x8] sm:$0xf]
    %v341 = vld [vmem:[%s337 + $0xc] sm:$0xf]
    %v342 = vld [vmem:[%s337 + $0x10] sm:$0xf]
    %v343 = vld [vmem:[%s337 + $0x14] sm:$0xf]
    %v344 = vld [vmem:[%s337 + $0x18] sm:$0xf]
    %v345 = vld [vmem:[%s337 + $0x1c] sm:$0xf]
    %v346 = vld [vmem:[%s337 + $0x20] sm:$0xf]
    %v347 = vld [vmem:[%s337 + $0x24] sm:$0xf]
    %v348 = vld [vmem:[%s337 + $0x28] sm:$0xf]
    %v349 = vld [vmem:[%s337 + $0x2c] sm:$0xf]
    %v350 = vld [vmem:[%s337 + $0x30] sm:$0x3]
    %v364 = vunpack.c.l.b16 %v338
    %v365 = vunpack.c.l.b16 %v339
    %v366 = vunpack.c.l.b16 %v340
    %v367 = vunpack.c.l.b16 %v341
    %v368 = vunpack.c.l.b16 %v342
    %v369 = vunpack.c.l.b16 %v343
    %v370 = vunpack.c.l.b16 %v344
    %v371 = vunpack.c.l.b16 %v345
    %v372 = vunpack.c.l.b16 %v346
    %v373 = vunpack.c.l.b16 %v347
    %v374 = vunpack.c.l.b16 %v348
    %v375 = vunpack.c.l.b16 %v349
    %v376 = vunpack.c.l.b16 %v350
    %v377 = vpack.c.b16 %v365, %v364
    %v378 = vpack.c.b16 %v367, %v366
    %v379 = vpack.c.b16 %v369, %v368
    %v380 = vpack.c.b16 %v371, %v370
    %v381 = vpack.c.b16 %v373, %v372
    %v382 = vpack.c.b16 %v375, %v374
    %v383 = vpack.c.b16 %v376, %v376
    %v391 = vsel %vm89, %v383, 0
    %393 = vmatpush.bf16.msra.mxu0 0
    %394 = vmatpush.bf16.msra.mxu0 %v391
    %395 = vmatpush.bf16.msra.mxu0 %v382
    %396 = vmatpush.bf16.msra.mxu0 %v381
    %397 = vmatpush.bf16.msra.mxu0 %v380
    %398 = vmatpush.bf16.msra.mxu0 %v379
    %399 = vmatpush.bf16.msra.mxu0 %v378
    %400 = vmatpush.bf16.msra.mxu0 %v377
    %401 = vmatmul.bf16.gmra.mxu0 %v84
    %v402 = vpop.f32.mrf.mxu0
    %v403 = vadd.f32 0.0, %v402
    %v404 = vpop.f32.mrf.mxu0
    %v405 = vadd.f32 0.0, %v404
    %406 = vmatmul.bf16.gmra.mxu0 %v87
    %v407 = vpop.f32.mrf.mxu0
    %v408 = vadd.f32 0.0, %v407
    %v409 = vpop.f32.mrf.mxu0
    %v410 = vadd.f32 0.0, %v409
    %411 = vdwg.mxu0
    %s412 = scalar_lea.vmem %s1, 260
    %v413 = vld [vmem:[%s412] sm:$0xf]
    %v414 = vld [vmem:[%s412 + $0x4] sm:$0xf]
    %v415 = vld [vmem:[%s412 + $0x8] sm:$0xf]
    %v416 = vld [vmem:[%s412 + $0xc] sm:$0xf]
    %v417 = vld [vmem:[%s412 + $0x10] sm:$0xf]
    %v418 = vld [vmem:[%s412 + $0x14] sm:$0xf]
    %v419 = vld [vmem:[%s412 + $0x18] sm:$0xf]
    %v420 = vld [vmem:[%s412 + $0x1c] sm:$0xf]
    %v421 = vld [vmem:[%s412 + $0x20] sm:$0xf]
    %v422 = vld [vmem:[%s412 + $0x24] sm:$0xf]
    %v423 = vld [vmem:[%s412 + $0x28] sm:$0xf]
    %v424 = vld [vmem:[%s412 + $0x2c] sm:$0xf]
    %v425 = vld [vmem:[%s412 + $0x30] sm:$0x3]
    %v439 = vunpack.c.l.b16 %v413
    %v440 = vunpack.c.l.b16 %v414
    %v441 = vunpack.c.l.b16 %v415
    %v442 = vunpack.c.l.b16 %v416
    %v443 = vunpack.c.l.b16 %v417
    %v444 = vunpack.c.l.b16 %v418
    %v445 = vunpack.c.l.b16 %v419
    %v446 = vunpack.c.l.b16 %v420
    %v447 = vunpack.c.l.b16 %v421
    %v448 = vunpack.c.l.b16 %v422
    %v449 = vunpack.c.l.b16 %v423
    %v450 = vunpack.c.l.b16 %v424
    %v451 = vunpack.c.l.b16 %v425
    %v452 = vpack.c.b16 %v440, %v439
    %v453 = vpack.c.b16 %v442, %v441
    %v454 = vpack.c.b16 %v444, %v443
    %v455 = vpack.c.b16 %v446, %v445
    %v456 = vpack.c.b16 %v448, %v447
    %v457 = vpack.c.b16 %v450, %v449
    %v458 = vpack.c.b16 %v451, %v451
    %v466 = vsel %vm89, %v458, 0
    %468 = vmatpush.bf16.msra.mxu0 0
    %469 = vmatpush.bf16.msra.mxu0 %v466
    %470 = vmatpush.bf16.msra.mxu0 %v457
    %471 = vmatpush.bf16.msra.mxu0 %v456
    %472 = vmatpush.bf16.msra.mxu0 %v455
    %473 = vmatpush.bf16.msra.mxu0 %v454
    %474 = vmatpush.bf16.msra.mxu0 %v453
    %475 = vmatpush.bf16.msra.mxu0 %v452
    %476 = vmatmul.bf16.gmra.mxu0 %v84
    %v477 = vpop.f32.mrf.mxu0
    %v478 = vadd.f32 0.0, %v477
    %v479 = vpop.f32.mrf.mxu0
    %v480 = vadd.f32 0.0, %v479
    %481 = vmatmul.bf16.gmra.mxu0 %v87
    %v482 = vpop.f32.mrf.mxu0
    %v483 = vadd.f32 0.0, %v482
    %v484 = vpop.f32.mrf.mxu0
    %v485 = vadd.f32 0.0, %v484
    %486 = vdwg.mxu0
    %s487 = scalar_lea.vmem %s1, 312
    %v488 = vld [vmem:[%s487] sm:$0xf]
    %v489 = vld [vmem:[%s487 + $0x4] sm:$0xf]
    %v490 = vld [vmem:[%s487 + $0x8] sm:$0xf]
    %v491 = vld [vmem:[%s487 + $0xc] sm:$0xf]
    %v492 = vld [vmem:[%s487 + $0x10] sm:$0xf]
    %v493 = vld [vmem:[%s487 + $0x14] sm:$0xf]
    %v494 = vld [vmem:[%s487 + $0x18] sm:$0xf]
    %v495 = vld [vmem:[%s487 + $0x1c] sm:$0xf]
    %v496 = vld [vmem:[%s487 + $0x20] sm:$0xf]
    %v497 = vld [vmem:[%s487 + $0x24] sm:$0xf]
    %v498 = vld [vmem:[%s487 + $0x28] sm:$0xf]
    %v499 = vld [vmem:[%s487 + $0x2c] sm:$0xf]
    %v500 = vld [vmem:[%s487 + $0x30] sm:$0x3]
    %v514 = vunpack.c.l.b16 %v488
    %v515 = vunpack.c.l.b16 %v489
    %v516 = vunpack.c.l.b16 %v490
    %v517 = vunpack.c.l.b16 %v491
    %v518 = vunpack.c.l.b16 %v492
    %v519 = vunpack.c.l.b16 %v493
    %v520 = vunpack.c.l.b16 %v494
    %v521 = vunpack.c.l.b16 %v495
    %v522 = vunpack.c.l.b16 %v496
    %v523 = vunpack.c.l.b16 %v497
    %v524 = vunpack.c.l.b16 %v498
    %v525 = vunpack.c.l.b16 %v499
    %v526 = vunpack.c.l.b16 %v500
    %v527 = vpack.c.b16 %v515, %v514
    %v528 = vpack.c.b16 %v517, %v516
    %v529 = vpack.c.b16 %v519, %v518
    %v530 = vpack.c.b16 %v521, %v520
    %v531 = vpack.c.b16 %v523, %v522
    %v532 = vpack.c.b16 %v525, %v524
    %v533 = vpack.c.b16 %v526, %v526
    %v541 = vsel %vm89, %v533, 0
    %543 = vmatpush.bf16.msra.mxu0 0
    %544 = vmatpush.bf16.msra.mxu0 %v541
    %545 = vmatpush.bf16.msra.mxu0 %v532
    %546 = vmatpush.bf16.msra.mxu0 %v531
    %547 = vmatpush.bf16.msra.mxu0 %v530
    %548 = vmatpush.bf16.msra.mxu0 %v529
    %549 = vmatpush.bf16.msra.mxu0 %v528
    %550 = vmatpush.bf16.msra.mxu0 %v527
    %551 = vmatmul.bf16.gmra.mxu0 %v84
    %v552 = vpop.f32.mrf.mxu0
    %v553 = vadd.f32 0.0, %v552
    %v554 = vpop.f32.mrf.mxu0
    %v555 = vadd.f32 0.0, %v554
    %556 = vmatmul.bf16.gmra.mxu0 %v87
    %v557 = vpop.f32.mrf.mxu0
    %v558 = vadd.f32 0.0, %v557
    %v559 = vpop.f32.mrf.mxu0
    %v560 = vadd.f32 0.0, %v559
    %561 = vdwg.mxu0
    %s562 = scalar_lea.vmem %s1, 364
    %v563 = vld [vmem:[%s562] sm:$0xf]
    %v564 = vld [vmem:[%s562 + $0x4] sm:$0xf]
    %v565 = vld [vmem:[%s562 + $0x8] sm:$0xf]
    %v566 = vld [vmem:[%s562 + $0xc] sm:$0xf]
    %v567 = vld [vmem:[%s562 + $0x10] sm:$0xf]
    %v568 = vld [vmem:[%s562 + $0x14] sm:$0xf]
    %v569 = vld [vmem:[%s562 + $0x18] sm:$0xf]
    %v570 = vld [vmem:[%s562 + $0x1c] sm:$0xf]
    %v571 = vld [vmem:[%s562 + $0x20] sm:$0xf]
    %v572 = vld [vmem:[%s562 + $0x24] sm:$0xf]
    %v573 = vld [vmem:[%s562 + $0x28] sm:$0xf]
    %v574 = vld [vmem:[%s562 + $0x2c] sm:$0xf]
    %v575 = vld [vmem:[%s562 + $0x30] sm:$0x3]
    %v589 = vunpack.c.l.b16 %v563
    %v590 = vunpack.c.l.b16 %v564
    %v591 = vunpack.c.l.b16 %v565
    %v592 = vunpack.c.l.b16 %v566
    %v593 = vunpack.c.l.b16 %v567
    %v594 = vunpack.c.l.b16 %v568
    %v595 = vunpack.c.l.b16 %v569
    %v596 = vunpack.c.l.b16 %v570
    %v597 = vunpack.c.l.b16 %v571
    %v598 = vunpack.c.l.b16 %v572
    %v599 = vunpack.c.l.b16 %v573
    %v600 = vunpack.c.l.b16 %v574
    %v601 = vunpack.c.l.b16 %v575
    %v602 = vpack.c.b16 %v590, %v589
    %v603 = vpack.c.b16 %v592, %v591
    %v604 = vpack.c.b16 %v594, %v593
    %v605 = vpack.c.b16 %v596, %v595
    %v606 = vpack.c.b16 %v598, %v597
    %v607 = vpack.c.b16 %v600, %v599
    %v608 = vpack.c.b16 %v601, %v601
    %v616 = vsel %vm89, %v608, 0
    %618 = vmatpush.bf16.msra.mxu0 0
    %619 = vmatpush.bf16.msra.mxu0 %v616
    %620 = vmatpush.bf16.msra.mxu0 %v607
    %621 = vmatpush.bf16.msra.mxu0 %v606
    %622 = vmatpush.bf16.msra.mxu0 %v605
    %623 = vmatpush.bf16.msra.mxu0 %v604
    %624 = vmatpush.bf16.msra.mxu0 %v603
    %625 = vmatpush.bf16.msra.mxu0 %v602
    %626 = vmatmul.bf16.gmra.mxu0 %v84
    %v627 = vpop.f32.mrf.mxu0
    %v628 = vadd.f32 0.0, %v627
    %v629 = vpop.f32.mrf.mxu0
    %v630 = vadd.f32 0.0, %v629
    %631 = vmatmul.bf16.gmra.mxu0 %v87
    %v632 = vpop.f32.mrf.mxu0
    %v633 = vadd.f32 0.0, %v632
    %v634 = vpop.f32.mrf.mxu0
    %v635 = vadd.f32 0.0, %v634
    %636 = vdwg.mxu0
    %s637 = scalar_lea.vmem %s1, 416
    %v638 = vld [vmem:[%s637] sm:$0xf]
    %v639 = vld [vmem:[%s637 + $0x4] sm:$0xf]
    %v640 = vld [vmem:[%s637 + $0x8] sm:$0xf]
    %v641 = vld [vmem:[%s637 + $0xc] sm:$0xf]
    %v642 = vld [vmem:[%s637 + $0x10] sm:$0xf]
    %v643 = vld [vmem:[%s637 + $0x14] sm:$0xf]
    %v644 = vld [vmem:[%s637 + $0x18] sm:$0xf]
    %v645 = vld [vmem:[%s637 + $0x1c] sm:$0xf]
    %v646 = vld [vmem:[%s637 + $0x20] sm:$0xf]
    %v647 = vld [vmem:[%s637 + $0x24] sm:$0xf]
    %v648 = vld [vmem:[%s637 + $0x28] sm:$0xf]
    %v649 = vld [vmem:[%s637 + $0x2c] sm:$0xf]
    %v650 = vld [vmem:[%s637 + $0x30] sm:$0x3]
    %v664 = vunpack.c.l.b16 %v638
    %v665 = vunpack.c.l.b16 %v639
    %v666 = vunpack.c.l.b16 %v640
    %v667 = vunpack.c.l.b16 %v641
    %v668 = vunpack.c.l.b16 %v642
    %v669 = vunpack.c.l.b16 %v643
    %v670 = vunpack.c.l.b16 %v644
    %v671 = vunpack.c.l.b16 %v645
    %v672 = vunpack.c.l.b16 %v646
    %v673 = vunpack.c.l.b16 %v647
    %v674 = vunpack.c.l.b16 %v648
    %v675 = vunpack.c.l.b16 %v649
    %v676 = vunpack.c.l.b16 %v650
    %v677 = vpack.c.b16 %v665, %v664
    %v678 = vpack.c.b16 %v667, %v666
    %v679 = vpack.c.b16 %v669, %v668
    %v680 = vpack.c.b16 %v671, %v670
    %v681 = vpack.c.b16 %v673, %v672
    %v682 = vpack.c.b16 %v675, %v674
    %v683 = vpack.c.b16 %v676, %v676
    %v691 = vsel %vm89, %v683, 0
    %693 = vmatpush.bf16.msra.mxu0 0
    %694 = vmatpush.bf16.msra.mxu0 %v691
    %695 = vmatpush.bf16.msra.mxu0 %v682
    %696 = vmatpush.bf16.msra.mxu0 %v681
    %697 = vmatpush.bf16.msra.mxu0 %v680
    %698 = vmatpush.bf16.msra.mxu0 %v679
    %699 = vmatpush.bf16.msra.mxu0 %v678
    %700 = vmatpush.bf16.msra.mxu0 %v677
    %701 = vmatmul.bf16.gmra.mxu0 %v84
    %v702 = vpop.f32.mrf.mxu0
    %v703 = vadd.f32 0.0, %v702
    %v704 = vpop.f32.mrf.mxu0
    %v705 = vadd.f32 0.0, %v704
    %706 = vmatmul.bf16.gmra.mxu0 %v87
    %v707 = vpop.f32.mrf.mxu0
    %v708 = vadd.f32 0.0, %v707
    %v709 = vpop.f32.mrf.mxu0
    %v710 = vadd.f32 0.0, %v709
    %711 = vdwg.mxu0
    %v712 = vmax.f32 %v103, %v178
    %v713 = vmax.f32 %v105, %v180
    %v714 = vmax.f32 %v108, %v183
    %v715 = vmax.f32 %v110, %v185
    %v716 = vmax.f32 %v253, %v328
    %v717 = vmax.f32 %v255, %v330
    %v718 = vmax.f32 %v258, %v333
    %v719 = vmax.f32 %v260, %v335
    %v720 = vmax.f32 %v403, %v478
    %v721 = vmax.f32 %v405, %v480
    %v722 = vmax.f32 %v408, %v483
    %v723 = vmax.f32 %v410, %v485
    %v724 = vmax.f32 %v553, %v628
    %v725 = vmax.f32 %v555, %v630
    %v726 = vmax.f32 %v558, %v633
    %v727 = vmax.f32 %v560, %v635
    %v728 = vmax.f32 %v712, %v716
    %v729 = vmax.f32 %v713, %v717
    %v730 = vmax.f32 %v714, %v718
    %v731 = vmax.f32 %v715, %v719
    %v732 = vmax.f32 %v720, %v724
    %v733 = vmax.f32 %v721, %v725
    %v734 = vmax.f32 %v722, %v726
    %v735 = vmax.f32 %v723, %v727
    %v736 = vmax.f32 %v728, %v732
    %v737 = vmax.f32 %v729, %v733
    %v738 = vmax.f32 %v730, %v734
    %v739 = vmax.f32 %v731, %v735
    %v740 = vmax.f32 %v736, %v703
    %v741 = vmax.f32 %v737, %v705
    %v742 = vmax.f32 %v738, %v708
    %v743 = vmax.f32 %v739, %v710
    %v744 = vld [vmem:[%s2] sm:$0x1]
    %v746 = vperm.slane %v744, 0
    %v748 = vadd.f32 %v740, %v746
    %v749 = vadd.f32 %v741, %v746
    %v750 = vadd.f32 %v742, %v746
    %v751 = vadd.f32 %v743, %v746
    %v752 = vtanh.pop %v748
    %v753 = vtanh.pop %v749
    %v754 = vtanh.pop %v750
    %v755 = vtanh.pop %v751
    %vm756 = vcmask 64512
    %757 = vst.msk [vmem:[#allocation2] sm:$0xff] %vm756, %v752
    %758 = vst.msk [vmem:[#allocation2 + $0x8] sm:$0xff] %vm756, %v753
    %759 = vst.msk [vmem:[#allocation2 + $0x10] sm:$0xff] %vm756, %v754
    %760 = vst.msk [vmem:[#allocation2 + $0x18] sm:$0xff] %vm756, %v755
    // Predicated region
    $region14: #{forward.1} parent=1 // pred_check
      _
    $region15: #{forward.1} parent=1 // pred_check_branch
      %762 = sbr.rel (0) target = $region17
    $region16: #{forward.1} parent=1 // pred_region
      %764 = vsyncadd [#allocation3], 0
      %s765 = sshll.u32 [#allocation2], 4
      %s766 = int_to_ptr.vmem [resolvable:$true] %s765
      %s767 = sshll.u32 %s3, 4
      %s768 = int_to_ptr.hbm [resolvable:$true] %s767
      %773 = dma.vmem_to_hbm [thread:$0]  %s766, 512, %s768, [#allocation3], 128, 128, 8
    $region17: #{forward.1} parent=1 // pred_fallthru
      _
    // Predicated region
    $region18: #{forward.1} parent=1 // pred_check
      _
    $region19: #{forward.1} parent=1 // pred_check_branch
      %775 = sbr.rel (0) target = $region21
    $region20: #{forward.1} parent=1 // pred_region
      %777 = dma.done [#allocation3], 512
    $region21: #{forward.1} parent=1 // pred_fallthru
      _
    %778 = vsyncpa [#allocation3], 1

</llo_original>
